<compile_context>
chip_gen: v7x
topology: tpu7x:2x2x1
jax: 0.10.0
libtpu: 0.0.40
codegen_flags: <defaults>
</compile_context>

<pallas_src>
import functools

import jax
import jax.numpy as jnp
from jax.experimental import pallas as pl
from jax.experimental.pallas import tpu as pltpu


# ---------------------------------------------------------------------------
# Stage 1: global average pool (the only HBM-heavy part).
# ---------------------------------------------------------------------------

def gap_full_kernel(x_ref, gap_ref, *, inv_hw):
    # x_ref: (b_t, C, HW) full-row block (HW is the full last dim -> exact DMA
    # bytes, no junk lanes, no masking).  gap_ref: (b_t, C) f32.
    gap_ref[...] = jnp.sum(x_ref[...], axis=-1, dtype=jnp.float32) * inv_hw


def gap_stream_kernel(x_ref, gap_ref, acc_ref, *, hw, hw_t, inv_hw, ragged,
                      c_chunk):
    # x_ref:   (1, C, hw_t)  one batch row, one spatial tile (native dtype)
    # gap_ref: (1, C) f32    written only on the final spatial step
    # acc_ref: (1, C, 128) f32  128-lane partial sums (VPU-only inner loop)
    k = pl.program_id(1)
    nk = pl.num_programs(1)
    C = acc_ref.shape[1]
    n_groups = hw_t // 128

    @pl.when(k == 0)
    def _():
        acc_ref[...] = jnp.zeros_like(acc_ref)

    def accumulate(masked):
        # Channel chunks bound live vregs; lane-group adds are pure VPU work
        # (no per-tile cross-lane reduce / relayout).
        for c0 in range(0, C, c_chunk):
            cs = min(c_chunk, C - c0)
            partial = jnp.zeros((1, cs, 128), jnp.float32)
            for g in range(n_groups):
                blk = x_ref[:, c0:c0 + cs, g * 128:(g + 1) * 128]
                blk = blk.astype(jnp.float32)
                if masked:
                    # Ragged tail tile: zero the lanes past the true HW
                    # (Pallas fills out-of-bounds block data with undefined
                    # values, not zeros).
                    lane = jax.lax.broadcasted_iota(jnp.int32, blk.shape, 2)
                    pos = k * hw_t + g * 128 + lane
                    blk = jnp.where(pos < hw, blk, 0.0)
                partial = partial + blk
            acc_ref[:, c0:c0 + cs, :] += partial

    if ragged:
        @pl.when(k == nk - 1)
        def _():
            accumulate(masked=True)

        @pl.when(k < nk - 1)
        def _():
            accumulate(masked=False)
    else:
        accumulate(masked=False)

    @pl.when(k == nk - 1)
    def _():
        # Single cross-lane reduce + scale, once per batch row.
        gap_ref[...] = jnp.sum(acc_ref[...], axis=-1) * inv_hw


# ---------------------------------------------------------------------------
# Stage 2: tiny batched FC epilogue (fc1 -> ReLU -> fc2 -> sigmoid).
# ---------------------------------------------------------------------------

def se_fc_kernel(gap_ref, w1_ref, b1_ref, w2_ref, b2_ref, o_ref):
    gap = gap_ref[...]                                   # (B, C) f32
    w1 = w1_ref[...]
    h = jnp.dot(gap.astype(w1.dtype), w1, preferred_element_type=jnp.float32)
    h = jnp.maximum(h + b1_ref[...].astype(jnp.float32), 0.0)
    w2 = w2_ref[...]
    z = jnp.dot(h.astype(w2.dtype), w2, preferred_element_type=jnp.float32)
    z = z + b2_ref[...].astype(jnp.float32)
    o_ref[...] = (1.0 / (1.0 + jnp.exp(-z))).astype(o_ref.dtype)  # exp -> EUP


# ---------------------------------------------------------------------------
# Wrapper
# ---------------------------------------------------------------------------

def _round_up(a, m):
    return ((a + m - 1) // m) * m


def _vmem_budget(max_tile_bytes=None):
    """Per-x-buffer tile budget and scoped-VMEM limit, generation aware."""
    try:
        vmem_cap = int(pltpu.get_tpu_info().vmem_capacity_bytes)
    except Exception:
        vmem_cap = 0
    if vmem_cap <= 0:
        vmem_cap = 64 * 1024 * 1024          # v7x per-TensorCore (most restrictive)
    per_buf = min(vmem_cap // 5, 16 * 1024 * 1024)
    if max_tile_bytes is not None:
        per_buf = max(1, min(per_buf, int(max_tile_bytes)))
    # double-buffered x stream + accumulator/output + slack, capped well under
    # the physical capacity on every generation.
    vmem_limit = min(vmem_cap * 3 // 4, 2 * per_buf + (16 << 20))
    return per_buf, int(vmem_limit)


def se_module_forward(x, w1, b1, w2, b2, *, max_tile_bytes=None):
    """SEModule forward. x: (B, C, H, W) NCHW.  Returns (B, C, 1, 1)."""
    B, C, H, W = x.shape
    HW = H * W
    itemsize = jnp.dtype(x.dtype).itemsize
    x_flat = x.reshape(B, C, HW)

    per_buf, vmem_limit = _vmem_budget(max_tile_bytes)
    row_bytes = C * HW * itemsize

    if row_bytes <= per_buf or HW < 128:
        # ---- Regime A: whole rows per block (exact bytes, no masking). ----
        b_t = min(B, max(1, per_buf // max(1, row_bytes)))
        gap = pl.pallas_call(
            functools.partial(gap_full_kernel, inv_hw=1.0 / HW),
            out_shape=jax.ShapeDtypeStruct((B, C), jnp.float32),
            grid_spec=pltpu.PrefetchScalarGridSpec(
                num_scalar_prefetch=0,
                grid=(pl.cdiv(B, b_t),),
                in_specs=[pl.BlockSpec((b_t, C, HW), lambda b: (b, 0, 0))],
                out_specs=pl.BlockSpec((b_t, C), lambda b: (b, 0)),
            ),
            compiler_params=pltpu.CompilerParams(
                dimension_semantics=("parallel",),
                vmem_limit_bytes=vmem_limit,
            ),
        )(x_flat)
    else:
        # ---- Regime B: stream spatial tiles, mask the ragged tail. ----
        max_lanes = max(1, per_buf // max(1, C * itemsize))
        hw_t = max(128, (max_lanes // 128) * 128)
        hw_t = min(hw_t, 32768, _round_up(HW, 128))   # lane-dense, bounded unroll
        nk = pl.cdiv(HW, hw_t)
        ragged = (HW % hw_t) != 0
        kernel = functools.partial(
            gap_stream_kernel, hw=HW, hw_t=hw_t, inv_hw=1.0 / HW,
            ragged=ragged, c_chunk=128)
        gap = pl.pallas_call(
            kernel,
            out_shape=jax.ShapeDtypeStruct((B, C), jnp.float32),
            grid_spec=pltpu.PrefetchScalarGridSpec(
                num_scalar_prefetch=0,
                grid=(B, nk),
                in_specs=[pl.BlockSpec((1, C, hw_t), lambda b, k: (b, 0, k))],
                # Same output block across the reduction axis -> written only
                # on the final spatial step.
                out_specs=pl.BlockSpec((1, C), lambda b, k: (b, 0)),
                scratch_shapes=[pltpu.VMEM((1, C, 128), jnp.float32)],
            ),
            compiler_params=pltpu.CompilerParams(
                dimension_semantics=("parallel", "arbitrary"),
                vmem_limit_bytes=vmem_limit,
            ),
        )(x_flat)

    # Stage 2: one batched (M = B) FC epilogue; everything fits in VMEM.
    s = pl.pallas_call(
        se_fc_kernel,
        out_shape=jax.ShapeDtypeStruct((B, C), x.dtype),
    )(gap, w1, b1.reshape(1, -1), w2, b2.reshape(1, -1))

    return s.reshape(B, C, 1, 1)


def se_module_reference(x, w1, b1, w2, b2):
    """Pure-JAX reference mirroring the PyTorch forward."""
    B, C = x.shape[0], x.shape[1]
    gap = jnp.mean(x.astype(jnp.float32), axis=(2, 3))           # (B, C)
    h = jax.nn.relu(gap @ w1.astype(jnp.float32) + b1.astype(jnp.float32))
    s = jax.nn.sigmoid(h @ w2.astype(jnp.float32) + b2.astype(jnp.float32))
    return s.astype(x.dtype).reshape(B, C, 1, 1)


if __name__ == "__main__":
    key = jax.random.PRNGKey(0)

    def make_params(k, C, dtype=jnp.float32):
        Cr = C // 2
        kw1, kb1, kw2, kb2 = jax.random.split(k, 4)
        bound1 = 1.0 / (C ** 0.5)
        w1 = jax.random.uniform(kw1, (C, Cr), dtype, -bound1, bound1)
        b1 = jax.random.uniform(kb1, (Cr,), dtype, -bound1, bound1)
        bound2 = 1.0 / (Cr ** 0.5)
        w2 = jax.random.uniform(kw2, (Cr, C), dtype, -bound2, bound2)
        b2 = jax.random.uniform(kb2, (C,), dtype, -bound2, bound2)
        return w1, b1, w2, b2

    kx1, kx2, kp1, kp2 = jax.random.split(key, 4)

    # Case 1: small shape -> single-tile (regime A) path.
    B, C, H, W = 2, 4, 16, 16
    x = jax.random.normal(kx1, (B, C, H, W), dtype=jnp.float32)
    w1, b1, w2, b2 = make_params(kp1, C)
    out = jax.block_until_ready(se_module_forward(x, w1, b1, w2, b2))
    ref = se_module_reference(x, w1, b1, w2, b2)
    assert out.shape == (B, C, 1, 1), out.shape
    assert jnp.allclose(out, ref, atol=1e-5, rtol=1e-5), "regime A mismatch"

    # Case 2: force the streamed (regime B) path with a ragged tail tile
    # (HW = 169 -> one full 128-lane tile + a masked 41-lane tail).
    B2, C2, H2, W2 = 2, 8, 13, 13
    x2 = jax.random.normal(kx2, (B2, C2, H2, W2), dtype=jnp.float32)
    w1b, b1b, w2b, b2b = make_params(kp2, C2)
    out2 = jax.block_until_ready(
        se_module_forward(x2, w1b, b1b, w2b, b2b,
                          max_tile_bytes=C2 * 128 * 4))
    ref2 = se_module_reference(x2, w1b, b1b, w2b, b2b)
    assert out2.shape == (B2, C2, 1, 1), out2.shape
    assert jnp.allclose(out2, ref2, atol=1e-5, rtol=1e-5), "regime B mismatch"

    print("KERNEL_OK")
</pallas_src>

<mosaic_0001>
module attributes {stable_mosaic.version = 11 : i64} {
  func.func @gap_full_kernel(%arg0: i32, %arg1: memref<2x4x256xf32, #tpu.memory_space<vmem>>, %arg2: memref<2x4xf32, #tpu.memory_space<vmem>>) attributes {dimension_semantics = [#tpu.dimension_semantics<parallel>], iteration_bounds = array<i64: 1>, scalar_prefetch = 0 : i64, scratch_operands = 0 : i64, tpu.core_type = #tpu.core_type<tc>, window_params = [{transform_indices = @transform_0, window_bounds = array<i64: 2, 4, 256>}, {transform_indices = @transform_1, window_bounds = array<i64: 2, 4>}]} {
    %c0 = arith.constant 0 : index
    %c0_0 = arith.constant 0 : index
    %c0_1 = arith.constant 0 : index
    %0 = vector.load %arg1[%c0, %c0_0, %c0_1] : memref<2x4x256xf32, #tpu.memory_space<vmem>>, vector<2x4x256xf32>
    %cst = arith.constant dense<0.000000e+00> : vector<2x4xf32>
    %1 = vector.multi_reduction <add>, %0, %cst [2] : vector<2x4x256xf32> to vector<2x4xf32>
    %cst_2 = arith.constant 3.906250e-03 : f32
    %2 = vector.broadcast %cst_2 : f32 to vector<2x4xf32>
    %3 = arith.mulf %1, %2 : vector<2x4xf32>
    %c0_3 = arith.constant 0 : index
    %c0_4 = arith.constant 0 : index
    %4 = vector.load %arg2[%c0_3, %c0_4] : memref<2x4xf32, #tpu.memory_space<vmem>>, vector<2x4xf32>
    tpu.vector_store %arg2[%c0_3, %c0_4], %3 {strides = array<i32>} : memref<2x4xf32, #tpu.memory_space<vmem>>, vector<2x4xf32>,
    return
  }
  func.func @transform_0(%arg0: i32) -> (i32, i32, i32) {
    %c0_i32 = arith.constant 0 : i32
    %c0_i32_0 = arith.constant 0 : i32
    %c0_i32_1 = arith.constant 0 : i32
    return %arg0, %c0_i32, %c0_i32_0 : i32, i32, i32
  }
  func.func @transform_1(%arg0: i32) -> (i32, i32) {
    %c0_i32 = arith.constant 0 : i32
    %c0_i32_0 = arith.constant 0 : i32
    return %arg0, %c0_i32 : i32, i32
  }
}

</mosaic_0001>

<llo_original>
// kernel: tpu_custom_call.1
$region0: #{tpu_custom_call.1}
  #allocation0 [shape = 'u32[]', space=smem, size = 0x4, offset = 0x4, fixed_abs, tag = 'smem constant byte address 0x4 - core index']
  #allocation1 [shape = 'u32[144,128]{1,0:T(1,128)}', space=vmem, size = 0x12000, scoped, tag = 'internal scratch']
  %s0 = inlined_call_operand.hbm [shape: f32[2,4,256], index: 0, kind: input, shape index: {}]
  %s1 = inlined_call_operand.hbm [shape: f32[2,4], index: 1, kind: output, shape index: {}]
  %s2 = sld [smem:[#allocation0]]
  $region18: #{tpu_custom_call.1} parent=0
    _
  %s4 = ssub.s32 1, %s2
  %s5 = scalar_select 0, %s4, %s2
  $region1: #{tpu_custom_call.1} parent=0
    #allocation2 [shape = 'u8[8192]{0}', space=vmem, size = 0x2000, scoped, tag = 'input window, operand 0, single buffered']
    #allocation3 [shape = 's32[1]{0}', space=sflag, size = 0x4, scoped, tag = 'scoped memory for tpu_custom_call.1']
    #allocation4 [shape = 's32[1]{0}', space=sflag, size = 0x4, scoped, tag = 'scoped memory for tpu_custom_call.1']
    #allocation5 [shape = 'u8[1024]{0}', space=vmem, size = 0x400, scoped, tag = 'output window, operand 0, single buffered']
    %6 = vsyncpa [#allocation3], 0
    %7 = vsyncpa [#allocation4], 0
    // Predicated region
    $region2: #{tpu_custom_call.1} parent=1 // pred_check
      _
    $region3: #{tpu_custom_call.1} parent=1 // pred_check_branch
      %9 = sbr.rel (0) target = $region5
    $region4: #{tpu_custom_call.1} parent=1 // pred_region
      %s11 = ssub.s32 256, 256
      %12 = vsyncadd [#allocation3], %s11
      %s13 = sshll.u32 [#allocation2], 4
      %s14 = int_to_ptr.vmem [resolvable:$true] %s13
      %19 = dma.hbm_to_vmem [thread:$0]  %s0, 256, %s14, [#allocation3], 128, 128, 8
    $region5: #{tpu_custom_call.1} parent=1 // pred_fallthru
      _
    // Predicated region
    $region6: #{tpu_custom_call.1} parent=1 // pred_check
      _
    $region7: #{tpu_custom_call.1} parent=1 // pred_check_branch
      %21 = sbr.rel (0) target = $region9
    $region8: #{tpu_custom_call.1} parent=1 // pred_region
      %22 = dma.done [#allocation3], 256
    $region9: #{tpu_custom_call.1} parent=1 // pred_fallthru
      _
    %v23 = vld [vmem:[#allocation2] sm:$0xff]
    %v24 = vld [vmem:[#allocation2 + $0x8] sm:$0xff]
    %v27 = vcombine.high %v23, %v23
    %v28 = vcombine.high %v24, %v24
    %vm31 = vcmask 1043456
    %v32 = vsel %vm31, %v23, 0.0
    %v33 = vsel %vm31, %v27, 0.0
    %v34 = vadd.f32 %v32, %v33
    %35 = vadd.xlane.f32.xlu0 %v34
    %v36 = vpop.xlane.xlu0 %35
    %v37 = vsel %vm31, %v24, 0.0
    %v38 = vsel %vm31, %v28, 0.0
    %v39 = vadd.f32 %v37, %v38
    %40 = vadd.xlane.f32.xlu0 %v39
    %v41 = vpop.xlane.xlu0 %40
    %v42 = vmul.f32 %v36, 0.00390625
    %v43 = vmul.f32 %v41, 0.00390625
    %v46 = vlaneseq
    %v47 = vand.u32 %v46, 127
    %v48 = vlaneseq
    %v49 = vshrl.u32 %v48, 7
    %v50 = vsub.s32 %v47, %v49
    %v51 = vrot.slane %v42, %v50
    %v52 = vlaneseq
    %v53 = vshrl.u32 %v52, 7
    %v54 = vsub.s32 %v47, %v53
    %v55 = vrot.slane %v43, %v54
    %vm56 = vcmask 1041409
    %v57 = vsel %vm56, %v55, %v51
    %vm59 = vcmask 25600
    %60 = vst.msk [vmem:[#allocation5] sm:$0x3] %vm59, %v57
    // Predicated region
    $region10: #{tpu_custom_call.1} parent=1 // pred_check
      _
    $region11: #{tpu_custom_call.1} parent=1 // pred_check_branch
      %62 = sbr.rel (0) target = $region13
    $region12: #{tpu_custom_call.1} parent=1 // pred_region
      %s64 = ssub.s32 32, 32
      %65 = vsyncadd [#allocation4], %s64
      %s67 = sshll.u32 [#allocation5], 4
      %s68 = int_to_ptr.vmem [resolvable:$true] %s67
      %70 = dma.vmem_to_hbm [thread:$0]  %s68, 32, %s1, [#allocation4]
    $region13: #{tpu_custom_call.1} parent=1 // pred_fallthru
      _
    // Predicated region
    $region14: #{tpu_custom_call.1} parent=1 // pred_check
      _
    $region15: #{tpu_custom_call.1} parent=1 // pred_check_branch
      %72 = sbr.rel (0) target = $region17
    $region16: #{tpu_custom_call.1} parent=1 // pred_region
      %73 = dma.done [#allocation4], 32
    $region17: #{tpu_custom_call.1} parent=1 // pred_fallthru
      _
    %74 = vsyncpa [#allocation3], 1
    %75 = vsyncpa [#allocation4], 1

</llo_original>
